<compile_context>
chip_gen: v7x
topology: tpu7x:2x2x1
jax: 0.10.0
libtpu: 0.0.40
codegen_flags: <defaults>
</compile_context>

<pallas_src>
import jax
import jax.numpy as jnp
from jax.experimental import pallas as pl
from jax.experimental.pallas import tpu as pltpu


LANES = 128


def linear_kernel(w_ref, b_ref, xt_ref, o_ref):
    """VPU scalar-broadcast FMA on a sublane-dense batch tile.

    w_ref:  SMEM (in_f,)          -- flattened weight, read as scalars
    b_ref:  SMEM (1,)             -- bias scalar
    xt_ref: VMEM (in_f, TBr, 128) -- batch tile, batch dense on (sublane, lane)
    o_ref:  VMEM (TBr, 128)       -- dense output tile (full unmasked stores)
    """
    in_f = xt_ref.shape[0]
    acc = jnp.full(o_ref.shape, b_ref[0], dtype=jnp.float32)
    for k in range(in_f):  # static unroll (in_f == 2)
        acc = acc + w_ref[k] * xt_ref[k].astype(jnp.float32)
    o_ref[...] = acc.astype(o_ref.dtype)


def custom_model_forward(x, weight, bias, *, max_rows_per_step=4096,
                         small_batch_fallback=32768):
    """Pallas implementation of CustomModel.forward (a single Linear(2, 1)).

    max_rows_per_step: tile height in 128-wide batch rows; 4096 rows
      = 512K batch elements = ~12 MiB double-buffered VMEM (dense layout).
    small_batch_fallback: below this many rows, use plain fused XLA.
    """
    B, in_f = x.shape
    out_f = weight.shape[0]
    assert out_f == 1, "CustomModel uses nn.Linear(2, 1)"

    # Small-batch fallback: launch/copy overheads dwarf the real work.
    if B < small_batch_fallback:
        return x @ weight.T + bias

    # Lane-dense layout: features on the leading axis, batch dense over
    # (sublane-row, lane).  Pad batch only to a multiple of 128.
    R = pl.cdiv(B, LANES)            # number of 128-wide batch rows
    B_pad = R * LANES
    xt = x.T                                     # (in_f, B)
    if B_pad != B:
        xt = jnp.pad(xt, ((0, 0), (0, B_pad - B)))
    xt = xt.reshape(in_f, R, LANES)              # free (row-major contiguous)

    tbr = min(R, max_rows_per_step)              # full extent or multiple of 8
    n_steps = pl.cdiv(R, tbr)                    # ragged last block is clipped

    w_flat = weight.reshape(-1).astype(jnp.float32)   # (in_f,)
    b_flat = bias.reshape(-1).astype(jnp.float32)     # (1,)

    itemsize = jnp.dtype(x.dtype).itemsize
    y2d = pl.pallas_call(
        linear_kernel,
        out_shape=jax.ShapeDtypeStruct((R, LANES), x.dtype),
        grid=(n_steps,),
        in_specs=[
            # Tiny parameters: SMEM scalars, no padded VMEM tiles / DMAs.
            pl.BlockSpec(memory_space=pltpu.MemorySpace.SMEM),   # weight
            pl.BlockSpec(memory_space=pltpu.MemorySpace.SMEM),   # bias
            # Dense activation tile: full feature extent, (TBr, 128) batch.
            pl.BlockSpec((in_f, tbr, LANES), lambda i: (0, i, 0)),
        ],
        out_specs=pl.BlockSpec((tbr, LANES), lambda i: (i, 0)),
        compiler_params=pltpu.CompilerParams(
            dimension_semantics=("parallel",),   # megacore-shardable on v7x
            vmem_limit_bytes=48 << 20,
        ),
        cost_estimate=pl.CostEstimate(
            flops=(2 * in_f + 1) * B_pad,
            transcendentals=0,
            bytes_accessed=(in_f + out_f) * itemsize * B_pad,
        ),
    )(w_flat, b_flat, xt)

    # (R, 128) rows are contiguous batch chunks -> flatten and drop padding.
    return y2d.reshape(B_pad, out_f)[:B]


if __name__ == "__main__":
    key = jax.random.PRNGKey(0)
    kx, kw, kb, kx2, kx3 = jax.random.split(key, 5)

    # nn.Linear(2, 1) parameter shapes, PyTorch-style uniform init.
    IN, OUT = 2, 1
    bound = 1.0 / jnp.sqrt(IN)
    weight = jax.random.uniform(kw, (OUT, IN), jnp.float32, -bound, bound)
    bias = jax.random.uniform(kb, (OUT,), jnp.float32, -bound, bound)

    # Small batch (the module's natural use): routed to the fused-XLA fallback.
    B = 8
    x = jax.random.normal(kx, (B, IN), jnp.float32)
    y = jax.block_until_ready(custom_model_forward(x, weight, bias))
    y_ref = x @ weight.T + bias
    assert y.shape == (B, OUT)
    assert jnp.allclose(y, y_ref, atol=1e-5, rtol=1e-5)

    # Pallas path (fallback disabled), non-multiple-of-128 batch -> padding.
    B2 = 1000
    x2 = jax.random.normal(kx2, (B2, IN), jnp.float32)
    y2 = jax.block_until_ready(
        custom_model_forward(x2, weight, bias, small_batch_fallback=0))
    y2_ref = x2 @ weight.T + bias
    assert y2.shape == (B2, OUT)
    assert jnp.allclose(y2, y2_ref, atol=1e-5, rtol=1e-5)

    # Pallas path with multiple grid steps and a ragged (clipped) last block.
    B3 = 3072   # R=24 rows, tile=16 rows -> 2 steps, last block ragged
    x3 = jax.random.normal(kx3, (B3, IN), jnp.float32)
    y3 = jax.block_until_ready(
        custom_model_forward(x3, weight, bias,
                             max_rows_per_step=16, small_batch_fallback=0))
    y3_ref = x3 @ weight.T + bias
    assert y3.shape == (B3, OUT)
    assert jnp.allclose(y3, y3_ref, atol=1e-5, rtol=1e-5)

    print("KERNEL_OK")
</pallas_src>

<mosaic_0001>
module attributes {stable_mosaic.version = 11 : i64} {
  func.func @linear_kernel(%arg0: i32, %arg1: memref<2xf32, #tpu.memory_space<smem>>, %arg2: memref<1xf32, #tpu.memory_space<smem>>, %arg3: memref<2x8x128xf32, #tpu.memory_space<vmem>>, %arg4: memref<8x128xf32, #tpu.memory_space<vmem>>) attributes {dimension_semantics = [#tpu.dimension_semantics<parallel>], iteration_bounds = array<i64: 1>, scalar_prefetch = 0 : i64, scratch_operands = 0 : i64, tpu.core_type = #tpu.core_type<tc>, window_params = [{transform_indices = @transform_0, window_bounds = array<i64: 2>}, {transform_indices = @transform_1, window_bounds = array<i64: 1>}, {transform_indices = @transform_2, window_bounds = array<i64: 2, 8, 128>}, {transform_indices = @transform_3, window_bounds = array<i64: 8, 128>}]} {
    %c0 = arith.constant 0 : index
    %0 = memref.load %arg2[%c0] : memref<1xf32, #tpu.memory_space<smem>>
    %1 = vector.broadcast %0 : f32 to vector<8x128xf32>
    %c0_0 = arith.constant 0 : index
    %2 = memref.load %arg1[%c0_0] : memref<2xf32, #tpu.memory_space<smem>>
    %c0_1 = arith.constant 0 : index
    %c0_2 = arith.constant 0 : index
    %c0_3 = arith.constant 0 : index
    %3 = vector.load %arg3[%c0_1, %c0_2, %c0_3] : memref<2x8x128xf32, #tpu.memory_space<vmem>>, vector<1x8x128xf32>
    %4 = vector.shape_cast %3 : vector<1x8x128xf32> to vector<8x128xf32>
    %5 = vector.broadcast %2 : f32 to vector<8x128xf32>
    %6 = arith.mulf %5, %4 : vector<8x128xf32>
    %7 = arith.addf %1, %6 : vector<8x128xf32>
    %c1 = arith.constant 1 : index
    %8 = memref.load %arg1[%c1] : memref<2xf32, #tpu.memory_space<smem>>
    %c1_4 = arith.constant 1 : index
    %c0_5 = arith.constant 0 : index
    %c0_6 = arith.constant 0 : index
    %9 = vector.load %arg3[%c1_4, %c0_5, %c0_6] : memref<2x8x128xf32, #tpu.memory_space<vmem>>, vector<1x8x128xf32>
    %10 = vector.shape_cast %9 : vector<1x8x128xf32> to vector<8x128xf32>
    %11 = vector.broadcast %8 : f32 to vector<8x128xf32>
    %12 = arith.mulf %11, %10 : vector<8x128xf32>
    %13 = arith.addf %7, %12 : vector<8x128xf32>
    %c0_7 = arith.constant 0 : index
    %c0_8 = arith.constant 0 : index
    %14 = vector.load %arg4[%c0_7, %c0_8] : memref<8x128xf32, #tpu.memory_space<vmem>>, vector<8x128xf32>
    tpu.vector_store %arg4[%c0_7, %c0_8], %13 {strides = array<i32>} : memref<8x128xf32, #tpu.memory_space<vmem>>, vector<8x128xf32>,
    return
  }
  func.func @transform_0(%arg0: i32) -> i32 {
    %c0_i32 = arith.constant 0 : i32
    %c0_i32_0 = arith.constant 0 : i32
    return %c0_i32 : i32
  }
  func.func @transform_1(%arg0: i32) -> i32 {
    %c0_i32 = arith.constant 0 : i32
    %c0_i32_0 = arith.constant 0 : i32
    return %c0_i32 : i32
  }
  func.func @transform_2(%arg0: i32) -> (i32, i32, i32) {
    %c0_i32 = arith.constant 0 : i32
    %c0_i32_0 = arith.constant 0 : i32
    %c0_i32_1 = arith.constant 0 : i32
    return %c0_i32, %arg0, %c0_i32_0 : i32, i32, i32
  }
  func.func @transform_3(%arg0: i32) -> (i32, i32) {
    %c0_i32 = arith.constant 0 : i32
    %c0_i32_0 = arith.constant 0 : i32
    return %arg0, %c0_i32 : i32, i32
  }
}

</mosaic_0001>

<llo_original>
// kernel: tpu_custom_call.1
$region0: #{tpu_custom_call.1}
  #allocation0 [shape = 'u32[]', space=smem, size = 0x4, offset = 0x4, fixed_abs, tag = 'smem constant byte address 0x4 - core index']
  #allocation1 [shape = 'u32[144,128]{1,0:T(1,128)}', space=vmem, size = 0x12000, scoped, tag = 'internal scratch']
  #allocation2 [shape = 'f32[1]{0:T(128)S(6)}', space=smem, size = 0x200, scoped, tag = 'scoped memory for tpu_custom_call.1']
  %s0 = inlined_call_operand.vmem [shape: f32[2], index: 0, kind: input, shape index: {}]
  %s1 = inlined_call_operand.<no memory space> [shape: f32[1], index: 1, kind: input, shape index: {}]
  %s2 = inlined_call_operand.hbm [shape: f32[2,8,128], index: 2, kind: input, shape index: {}]
  %s3 = inlined_call_operand.hbm [shape: f32[8,128], index: 3, kind: output, shape index: {}]
  %s4 = sld [smem:[#allocation0]]
  $region30: #{tpu_custom_call.1} parent=0
    _
  %s6 = ssub.s32 1, %s4
  %s7 = scalar_select 0, %s6, %s4
  %8 = sst [smem:[#allocation2]] %s1
  $region1: #{tpu_custom_call.1} parent=0
    #allocation3 [shape = 'u8[512]{0}', space=smem, size = 0x200, scoped, tag = 'input window, operand 0, single buffered']
    #allocation4 [shape = 's32[1]{0}', space=sflag, size = 0x4, scoped, tag = 'scoped memory for tpu_custom_call.1']
    #allocation5 [shape = 's32[1]{0}', space=sflag, size = 0x4, scoped, tag = 'scoped memory for tpu_custom_call.1']
    #allocation6 [shape = 's32[1]{0}', space=sflag, size = 0x4, scoped, tag = 'scoped memory for tpu_custom_call.1']
    #allocation7 [shape = 'u8[8192]{0}', space=vmem, size = 0x2000, scoped, tag = 'input window, operand 2, single buffered']
    #allocation8 [shape = 'u8[4096]{0}', space=vmem, size = 0x1000, scoped, tag = 'output window, operand 0, single buffered']
    %9 = vsyncpa [#allocation6], 0
    %10 = vsyncpa [#allocation4], 0
    %11 = vsyncpa [#allocation5], 0
    // Predicated region
    $region2: #{tpu_custom_call.1} parent=1 // pred_check
      _
    $region3: #{tpu_custom_call.1} parent=1 // pred_check_branch
      %13 = sbr.rel (0) target = $region5
    $region4: #{tpu_custom_call.1} parent=1 // pred_region
      %s15 = ssub.s32 16, 16
      %16 = vsyncadd [#allocation6], %s15
      %s18 = sshll.u32 %s0, 4
      %s19 = int_to_ptr.vmem [resolvable:$true] %s18
      %21 = dma.vmem_to_smem %s19, 16, [#allocation3], [#allocation6]
    $region5: #{tpu_custom_call.1} parent=1 // pred_fallthru
      _
    // Predicated region
    $region6: #{tpu_custom_call.1} parent=1 // pred_check
      _
    $region7: #{tpu_custom_call.1} parent=1 // pred_check_branch
      %23 = sbr.rel (0) target = $region9
    $region8: #{tpu_custom_call.1} parent=1 // pred_region
      _
    $region9: #{tpu_custom_call.1} parent=1 // pred_fallthru
      _
    // Predicated region
    $region10: #{tpu_custom_call.1} parent=1 // pred_check
      _
    $region11: #{tpu_custom_call.1} parent=1 // pred_check_branch
      %25 = sbr.rel (0) target = $region13
    $region12: #{tpu_custom_call.1} parent=1 // pred_region
      %s27 = ssub.s32 256, 256
      %28 = vsyncadd [#allocation4], %s27
      %s29 = sshll.u32 [#allocation7], 4
      %s30 = int_to_ptr.vmem [resolvable:$true] %s29
      %35 = dma.hbm_to_vmem [thread:$0]  %s2, 256, %s30, [#allocation4], 128, 128, 8
    $region13: #{tpu_custom_call.1} parent=1 // pred_fallthru
      _
    // Predicated region
    $region14: #{tpu_custom_call.1} parent=1 // pred_check
      _
    $region15: #{tpu_custom_call.1} parent=1 // pred_check_branch
      %37 = sbr.rel (0) target = $region17
    $region16: #{tpu_custom_call.1} parent=1 // pred_region
      %38 = dma.done [#allocation6], 16
    $region17: #{tpu_custom_call.1} parent=1 // pred_fallthru
      _
    // Predicated region
    $region18: #{tpu_custom_call.1} parent=1 // pred_check
      _
    $region19: #{tpu_custom_call.1} parent=1 // pred_check_branch
      %40 = sbr.rel (0) target = $region21
    $region20: #{tpu_custom_call.1} parent=1 // pred_region
      %41 = dma.done [#allocation4], 256
    $region21: #{tpu_custom_call.1} parent=1 // pred_fallthru
      _
    %42 = sfence
    %s43 = sld [smem:[#allocation2]]
    %v44 = vstv %s43
    %s45 = sld [smem:[#allocation3]]
    %v46 = vld [vmem:[#allocation7] sm:$0xff]
    %v47 = vstv %s45
    %v48 = vmul.f32 %v47, %v46
    %v49 = vadd.f32 %v44, %v48
    %s50 = sld [smem:[#allocation3 + $0x1]]
    %s51 = scalar_lea.vmem [#allocation7], 8
    %v52 = vld [vmem:[%s51] sm:$0xff]
    %v53 = vstv %s50
    %v54 = vmul.f32 %v53, %v52
    %v55 = vadd.f32 %v49, %v54
    %56 = vst [vmem:[#allocation8] sm:$0xff] %v55
    // Predicated region
    $region22: #{tpu_custom_call.1} parent=1 // pred_check
      _
    $region23: #{tpu_custom_call.1} parent=1 // pred_check_branch
      %58 = sbr.rel (0) target = $region25
    $region24: #{tpu_custom_call.1} parent=1 // pred_region
      %s60 = ssub.s32 128, 128
      %61 = vsyncadd [#allocation5], %s60
      %s63 = sshll.u32 [#allocation8], 4
      %s64 = int_to_ptr.vmem [resolvable:$true] %s63
      %66 = dma.vmem_to_hbm [thread:$0]  %s64, 128, %s3, [#allocation5]
    $region25: #{tpu_custom_call.1} parent=1 // pred_fallthru
      _
    // Predicated region
    $region26: #{tpu_custom_call.1} parent=1 // pred_check
      _
    $region27: #{tpu_custom_call.1} parent=1 // pred_check_branch
      %68 = sbr.rel (0) target = $region29
    $region28: #{tpu_custom_call.1} parent=1 // pred_region
      %69 = dma.done [#allocation5], 128
    $region29: #{tpu_custom_call.1} parent=1 // pred_fallthru
      _
    %70 = vsyncpa [#allocation4], 1
    %71 = vsyncpa [#allocation5], 1
    %72 = vsyncpa [#allocation6], 1

</llo_original>
